<compile_context>
chip_gen: v6e
topology: v6e:2x2x1
jax: 0.10.0
libtpu: 0.0.40
codegen_flags: <defaults>
</compile_context>

<pallas_src>
import jax
import jax.numpy as jnp
from jax.experimental import pallas as pl
from jax.experimental.pallas import tpu as pltpu

LANES = 128
SUBLANES = 8


def _round_up(n, m):
    return ((n + m - 1) // m) * m


def my_linear_kernel(x_ref, w_ref, b_ref, o_ref):
    """Per grid step: o = relu(x @ w + b) via K broadcast-MACs on the VPU.

    Shapes:
      x_ref: [TILE_B, K]       (K = in_units, tiny -> fully unrolled)
      w_ref: [K, N_PAD]        (N_PAD = 128 -> lane-dense)
      b_ref: [1, N_PAD]
      o_ref: [TILE_B, N_PAD]   (unmasked, full-lane stores)
    """
    x = x_ref[...].astype(jnp.float32)
    w = w_ref[...].astype(jnp.float32)
    b = b_ref[...].astype(jnp.float32)

    tile_b = x.shape[0]
    k_dim = w.shape[0]
    n_pad = w.shape[1]

    # Accumulator starts at the bias, broadcast over rows (done once per tile).
    acc = jnp.broadcast_to(b, (tile_b, n_pad))
    # K is tiny (5): explicit unrolled broadcast multiply-adds, skipping the
    # MXU entirely. Each step is a (tile_b,1) x (1,n_pad) outer-product MAC.
    for k in range(k_dim):
        acc = acc + x[:, k:k + 1] * w[k:k + 1, :]

    o_ref[...] = jnp.maximum(acc, 0.0).astype(o_ref.dtype)


def my_linear(x, weight, bias, *, tile_b=1024):
    """x: [B, in_units] f32, weight: [in_units, units] f32, bias: [units] f32."""
    B, in_units = x.shape
    units = weight.shape[1]

    # Lane-dense layout: pad output features to a full 128 lanes.
    n_pad = _round_up(max(units, 1), LANES)
    w_p = jnp.pad(weight.astype(x.dtype), ((0, 0), (0, n_pad - units)))
    b_p = jnp.pad(bias.astype(x.dtype).reshape(1, units),
                  ((0, 0), (0, n_pad - units)))

    # Batch tiling: multiple of 8 sublanes; up to `tile_b` rows per tile.
    tb = _round_up(min(tile_b, _round_up(B, SUBLANES)), SUBLANES)
    b_pad = _round_up(B, tb)
    x_in = x if b_pad == B else jnp.pad(x, ((0, b_pad - B), (0, 0)))
    grid = (b_pad // tb,)

    cost = pl.CostEstimate(
        flops=2 * b_pad * in_units * units + b_pad * units,
        transcendentals=0,
        bytes_accessed=(x_in.size + w_p.size + b_p.size + b_pad * n_pad)
        * x.dtype.itemsize,
    )

    out = pl.pallas_call(
        my_linear_kernel,
        out_shape=jax.ShapeDtypeStruct((b_pad, n_pad), x.dtype),
        grid_spec=pl.GridSpec(
            grid=grid,
            in_specs=[
                pl.BlockSpec((tb, in_units), lambda i: (i, 0)),
                # Constant index_maps -> W / b DMA'd once, resident across steps.
                pl.BlockSpec((in_units, n_pad), lambda i: (0, 0)),
                pl.BlockSpec((1, n_pad), lambda i: (0, 0)),
            ],
            out_specs=pl.BlockSpec((tb, n_pad), lambda i: (i, 0)),
        ),
        compiler_params=pltpu.CompilerParams(
            # Batch tiles are independent -> shard across TensorCores on v7x.
            dimension_semantics=("parallel",),
        ),
        cost_estimate=cost,
    )(x_in, w_p, b_p)

    # Slice away the lane / batch padding.
    return out[:B, :units]


if __name__ == "__main__":
    key = jax.random.PRNGKey(0)
    k_x, k_w, k_b = jax.random.split(key, 3)

    in_units, units = 5, 3
    batch = 8

    # Deterministic "randn"-style parameter init (matches torch.randn shapes).
    weight = jax.random.normal(k_w, (in_units, units), dtype=jnp.float32)
    bias = jax.random.normal(k_b, (units,), dtype=jnp.float32)
    x = jax.random.normal(k_x, (batch, in_units), dtype=jnp.float32)

    out = jax.block_until_ready(my_linear(x, weight, bias))

    # Pure-JAX reference check.
    ref = jnp.maximum(jnp.dot(x, weight) + bias, 0.0)
    assert out.shape == (batch, units)
    assert jnp.allclose(out, ref, atol=1e-5, rtol=1e-5)

    print("KERNEL_OK")
</pallas_src>

<mosaic_0001>
module attributes {stable_mosaic.version = 11 : i64} {
  func.func @my_linear_kernel(%arg0: i32, %arg1: memref<8x5xf32, #tpu.memory_space<vmem>>, %arg2: memref<5x128xf32, #tpu.memory_space<vmem>>, %arg3: memref<1x128xf32, #tpu.memory_space<vmem>>, %arg4: memref<8x128xf32, #tpu.memory_space<vmem>>) attributes {dimension_semantics = [#tpu.dimension_semantics<parallel>], iteration_bounds = array<i64: 1>, scalar_prefetch = 0 : i64, scratch_operands = 0 : i64, tpu.core_type = #tpu.core_type<tc>, window_params = [{transform_indices = @transform_0, window_bounds = array<i64: 8, 5>}, {pipeline_mode = #tpu.pipeline_mode<synchronous>, transform_indices = @transform_1, window_bounds = array<i64: 5, 128>}, {pipeline_mode = #tpu.pipeline_mode<synchronous>, transform_indices = @transform_2, window_bounds = array<i64: 1, 128>}, {transform_indices = @transform_3, window_bounds = array<i64: 8, 128>}]} {
    %c0 = arith.constant 0 : index
    %c0_0 = arith.constant 0 : index
    %0 = vector.load %arg1[%c0, %c0_0] : memref<8x5xf32, #tpu.memory_space<vmem>>, vector<8x5xf32>
    %c0_1 = arith.constant 0 : index
    %c0_2 = arith.constant 0 : index
    %1 = vector.load %arg2[%c0_1, %c0_2] : memref<5x128xf32, #tpu.memory_space<vmem>>, vector<5x128xf32>
    %c0_3 = arith.constant 0 : index
    %c0_4 = arith.constant 0 : index
    %2 = vector.load %arg3[%c0_3, %c0_4] : memref<1x128xf32, #tpu.memory_space<vmem>>, vector<1x128xf32>
    %3 = vector.shape_cast %2 : vector<1x128xf32> to vector<1x128xf32>
    %4 = vector.broadcast %3 : vector<1x128xf32> to vector<8x128xf32>
    %5 = vector.extract_strided_slice %0 {offsets = [0, 0], sizes = [8, 1], strides = [1, 1]} : vector<8x5xf32> to vector<8x1xf32>
    %6 = vector.extract_strided_slice %1 {offsets = [0, 0], sizes = [1, 128], strides = [1, 1]} : vector<5x128xf32> to vector<1x128xf32>
    %7 = vector.broadcast %5 : vector<8x1xf32> to vector<8x128xf32>
    %8 = vector.broadcast %6 : vector<1x128xf32> to vector<8x128xf32>
    %9 = arith.mulf %7, %8 : vector<8x128xf32>
    %10 = arith.addf %4, %9 : vector<8x128xf32>
    %11 = vector.extract_strided_slice %0 {offsets = [0, 1], sizes = [8, 1], strides = [1, 1]} : vector<8x5xf32> to vector<8x1xf32>
    %12 = vector.extract_strided_slice %1 {offsets = [1, 0], sizes = [1, 128], strides = [1, 1]} : vector<5x128xf32> to vector<1x128xf32>
    %13 = vector.broadcast %11 : vector<8x1xf32> to vector<8x128xf32>
    %14 = vector.broadcast %12 : vector<1x128xf32> to vector<8x128xf32>
    %15 = arith.mulf %13, %14 : vector<8x128xf32>
    %16 = arith.addf %10, %15 : vector<8x128xf32>
    %17 = vector.extract_strided_slice %0 {offsets = [0, 2], sizes = [8, 1], strides = [1, 1]} : vector<8x5xf32> to vector<8x1xf32>
    %18 = vector.extract_strided_slice %1 {offsets = [2, 0], sizes = [1, 128], strides = [1, 1]} : vector<5x128xf32> to vector<1x128xf32>
    %19 = vector.broadcast %17 : vector<8x1xf32> to vector<8x128xf32>
    %20 = vector.broadcast %18 : vector<1x128xf32> to vector<8x128xf32>
    %21 = arith.mulf %19, %20 : vector<8x128xf32>
    %22 = arith.addf %16, %21 : vector<8x128xf32>
    %23 = vector.extract_strided_slice %0 {offsets = [0, 3], sizes = [8, 1], strides = [1, 1]} : vector<8x5xf32> to vector<8x1xf32>
    %24 = vector.extract_strided_slice %1 {offsets = [3, 0], sizes = [1, 128], strides = [1, 1]} : vector<5x128xf32> to vector<1x128xf32>
    %25 = vector.broadcast %23 : vector<8x1xf32> to vector<8x128xf32>
    %26 = vector.broadcast %24 : vector<1x128xf32> to vector<8x128xf32>
    %27 = arith.mulf %25, %26 : vector<8x128xf32>
    %28 = arith.addf %22, %27 : vector<8x128xf32>
    %29 = vector.extract_strided_slice %0 {offsets = [0, 4], sizes = [8, 1], strides = [1, 1]} : vector<8x5xf32> to vector<8x1xf32>
    %30 = vector.extract_strided_slice %1 {offsets = [4, 0], sizes = [1, 128], strides = [1, 1]} : vector<5x128xf32> to vector<1x128xf32>
    %31 = vector.broadcast %29 : vector<8x1xf32> to vector<8x128xf32>
    %32 = vector.broadcast %30 : vector<1x128xf32> to vector<8x128xf32>
    %33 = arith.mulf %31, %32 : vector<8x128xf32>
    %34 = arith.addf %28, %33 : vector<8x128xf32>
    %cst = arith.constant 0.000000e+00 : f32
    %35 = vector.broadcast %cst : f32 to vector<8x128xf32>
    %36 = arith.maximumf %34, %35 : vector<8x128xf32>
    %c0_5 = arith.constant 0 : index
    %c0_6 = arith.constant 0 : index
    %37 = vector.load %arg4[%c0_5, %c0_6] : memref<8x128xf32, #tpu.memory_space<vmem>>, vector<8x128xf32>
    tpu.vector_store %arg4[%c0_5, %c0_6], %36 {strides = array<i32>} : memref<8x128xf32, #tpu.memory_space<vmem>>, vector<8x128xf32>,
    return
  }
  func.func @transform_0(%arg0: i32) -> (i32, i32) {
    %c0_i32 = arith.constant 0 : i32
    %c0_i32_0 = arith.constant 0 : i32
    return %arg0, %c0_i32 : i32, i32
  }
  func.func @transform_1(%arg0: i32) -> (i32, i32) {
    %c0_i32 = arith.constant 0 : i32
    %c0_i32_0 = arith.constant 0 : i32
    %c0_i32_1 = arith.constant 0 : i32
    return %c0_i32, %c0_i32_0 : i32, i32
  }
  func.func @transform_2(%arg0: i32) -> (i32, i32) {
    %c0_i32 = arith.constant 0 : i32
    %c0_i32_0 = arith.constant 0 : i32
    %c0_i32_1 = arith.constant 0 : i32
    return %c0_i32, %c0_i32_0 : i32, i32
  }
  func.func @transform_3(%arg0: i32) -> (i32, i32) {
    %c0_i32 = arith.constant 0 : i32
    %c0_i32_0 = arith.constant 0 : i32
    return %arg0, %c0_i32 : i32, i32
  }
}

</mosaic_0001>

<llo_original>
// kernel: tpu_custom_call.1
$region0: #{tpu_custom_call.1}
  #allocation0 [shape = 'u32[]', space=smem, size = 0x4, offset = 0x4, fixed_abs, tag = 'smem constant byte address 0x4 - core index']
  #allocation1 [shape = 'u32[144,128]{1,0:T(1,128)}', space=vmem, size = 0x12000, scoped, tag = 'internal scratch']
  %s0 = inlined_call_operand.hbm [shape: f32[8,5], index: 0, kind: input, shape index: {}]
  %s1 = inlined_call_operand.hbm [shape: f32[5,128], index: 1, kind: input, shape index: {}]
  %s2 = inlined_call_operand.vmem [shape: f32[1,128], index: 2, kind: input, shape index: {}]
  %s3 = inlined_call_operand.hbm [shape: f32[8,128], index: 3, kind: output, shape index: {}]
  %s4 = sld [smem:[#allocation0]]
  $region30: #{tpu_custom_call.1} parent=0
    _
  %s6 = ssub.s32 1, %s4
  %s7 = scalar_select 0, %s6, %s4
  $region1: #{tpu_custom_call.1} parent=0
    #allocation2 [shape = 'u8[4096]{0}', space=vmem, size = 0x1000, scoped, tag = 'input window, operand 0, single buffered']
    #allocation3 [shape = 's32[1]{0}', space=sflag, size = 0x4, scoped, tag = 'scoped memory for tpu_custom_call.1']
    #allocation4 [shape = 's32[1]{0}', space=sflag, size = 0x4, scoped, tag = 'scoped memory for tpu_custom_call.1']
    #allocation5 [shape = 'u8[4096]{0}', space=vmem, size = 0x1000, scoped, tag = 'input window, operand 1, single buffered']
    #allocation6 [shape = 's32[1]{0}', space=sflag, size = 0x4, scoped, tag = 'scoped memory for tpu_custom_call.1']
    #allocation7 [shape = 'u8[4096]{0}', space=vmem, size = 0x1000, scoped, tag = 'output window, operand 0, single buffered']
    %8 = vsyncpa [#allocation3], 0
    %9 = vsyncpa [#allocation6], 0
    %10 = vsyncpa [#allocation4], 0
    // Predicated region
    $region2: #{tpu_custom_call.1} parent=1 // pred_check
      _
    $region3: #{tpu_custom_call.1} parent=1 // pred_check_branch
      %12 = sbr.rel (0) target = $region5
    $region4: #{tpu_custom_call.1} parent=1 // pred_region
      %s14 = ssub.s32 128, 128
      %15 = vsyncadd [#allocation3], %s14
      %s17 = sshll.u32 [#allocation2], 4
      %s18 = int_to_ptr.vmem [resolvable:$true] %s17
      %20 = dma.hbm_to_vmem [thread:$0]  %s0, 128, %s18, [#allocation3]
    $region5: #{tpu_custom_call.1} parent=1 // pred_fallthru
      _
    // Predicated region
    $region6: #{tpu_custom_call.1} parent=1 // pred_check
      _
    $region7: #{tpu_custom_call.1} parent=1 // pred_check_branch
      %22 = sbr.rel (0) target = $region9
    $region8: #{tpu_custom_call.1} parent=1 // pred_region
      %s24 = ssub.s32 128, 128
      %25 = vsyncadd [#allocation6], %s24
      %s27 = sshll.u32 [#allocation5], 4
      %s28 = int_to_ptr.vmem [resolvable:$true] %s27
      %30 = dma.hbm_to_vmem [thread:$0]  %s1, 128, %s28, [#allocation6]
    $region9: #{tpu_custom_call.1} parent=1 // pred_fallthru
      _
    // Predicated region
    $region10: #{tpu_custom_call.1} parent=1 // pred_check
      _
    $region11: #{tpu_custom_call.1} parent=1 // pred_check_branch
      %32 = sbr.rel (0) target = $region13
    $region12: #{tpu_custom_call.1} parent=1 // pred_region
      _
    $region13: #{tpu_custom_call.1} parent=1 // pred_fallthru
      _
    // Predicated region
    $region14: #{tpu_custom_call.1} parent=1 // pred_check
      _
    $region15: #{tpu_custom_call.1} parent=1 // pred_check_branch
      %34 = sbr.rel (0) target = $region17
    $region16: #{tpu_custom_call.1} parent=1 // pred_region
      %35 = dma.done [#allocation3], 128
    $region17: #{tpu_custom_call.1} parent=1 // pred_fallthru
      _
    // Predicated region
    $region18: #{tpu_custom_call.1} parent=1 // pred_check
      _
    $region19: #{tpu_custom_call.1} parent=1 // pred_check_branch
      %37 = sbr.rel (0) target = $region21
    $region20: #{tpu_custom_call.1} parent=1 // pred_region
      %38 = dma.done [#allocation6], 128
    $region21: #{tpu_custom_call.1} parent=1 // pred_fallthru
      _
    %v39 = vld [vmem:[#allocation2] sm:$0xff]
    %v40 = vld [vmem:[#allocation5] sm:$0x1f]
    %v41 = vld [vmem:[%s2] sm:$0x1]
    %v43 = vlaneseq
    %v44 = vshrl.u32 %v43, 7
    %v45 = vsub.s32 0, %v44
    %v46 = vrot.slane %v41, %v45
    %49 = vset.pattern.permute.xlu0 0
    %50 = vperm.xlu0 %49, %v39
    %v51 = vpop.permute.xlu0 %50
    %v53 = vlaneseq
    %v54 = vshrl.u32 %v53, 7
    %v55 = vsub.s32 0, %v54
    %v56 = vrot.slane %v40, %v55
    %v57 = vmul.f32 %v51, %v56
    %v58 = vadd.f32 %v46, %v57
    %59 = vset.pattern.permute.xlu0 1
    %60 = vperm.xlu0 %59, %v39
    %v61 = vpop.permute.xlu0 %60
    %v63 = vlaneseq
    %v64 = vshrl.u32 %v63, 7
    %v65 = vsub.s32 1, %v64
    %v66 = vrot.slane %v40, %v65
    %v67 = vmul.f32 %v61, %v66
    %v68 = vadd.f32 %v58, %v67
    %69 = vset.pattern.permute.xlu0 2
    %70 = vperm.xlu0 %69, %v39
    %v71 = vpop.permute.xlu0 %70
    %v73 = vlaneseq
    %v74 = vshrl.u32 %v73, 7
    %v75 = vsub.s32 2, %v74
    %v76 = vrot.slane %v40, %v75
    %v77 = vmul.f32 %v71, %v76
    %v78 = vadd.f32 %v68, %v77
    %79 = vset.pattern.permute.xlu0 3
    %80 = vperm.xlu0 %79, %v39
    %v81 = vpop.permute.xlu0 %80
    %v83 = vlaneseq
    %v84 = vshrl.u32 %v83, 7
    %v85 = vsub.s32 3, %v84
    %v86 = vrot.slane %v40, %v85
    %v87 = vmul.f32 %v81, %v86
    %v88 = vadd.f32 %v78, %v87
    %89 = vset.pattern.permute.xlu0 4
    %90 = vperm.xlu0 %89, %v39
    %v91 = vpop.permute.xlu0 %90
    %v93 = vlaneseq
    %v94 = vshrl.u32 %v93, 7
    %v95 = vsub.s32 4, %v94
    %v96 = vrot.slane %v40, %v95
    %v97 = vmul.f32 %v91, %v96
    %v98 = vadd.f32 %v88, %v97
    %v99 = vmax.f32 %v98, 0.0
    %100 = vst [vmem:[#allocation7] sm:$0xff] %v99
    // Predicated region
    $region22: #{tpu_custom_call.1} parent=1 // pred_check
      _
    $region23: #{tpu_custom_call.1} parent=1 // pred_check_branch
      %102 = sbr.rel (0) target = $region25
    $region24: #{tpu_custom_call.1} parent=1 // pred_region
      %s104 = ssub.s32 128, 128
      %105 = vsyncadd [#allocation4], %s104
      %s107 = sshll.u32 [#allocation7], 4
      %s108 = int_to_ptr.vmem [resolvable:$true] %s107
      %110 = dma.vmem_to_hbm [thread:$0]  %s108, 128, %s3, [#allocation4]
    $region25: #{tpu_custom_call.1} parent=1 // pred_fallthru
      _
    // Predicated region
    $region26: #{tpu_custom_call.1} parent=1 // pred_check
      _
    $region27: #{tpu_custom_call.1} parent=1 // pred_check_branch
      %112 = sbr.rel (0) target = $region29
    $region28: #{tpu_custom_call.1} parent=1 // pred_region
      %113 = dma.done [#allocation4], 128
    $region29: #{tpu_custom_call.1} parent=1 // pred_fallthru
      _
    %114 = vsyncpa [#allocation3], 1
    %115 = vsyncpa [#allocation6], 1
    %116 = vsyncpa [#allocation4], 1

</llo_original>
